<compile_context>
chip_gen: v5e
topology: v5e:2x2
jax: 0.10.0
libtpu: 0.0.40
codegen_flags: <defaults>
</compile_context>

<pallas_src>
import jax
import jax.numpy as jnp
from jax.experimental import pallas as pl
from jax.experimental.pallas import tpu as pltpu

# ----------------------------- problem sizes --------------------------------
B = 2          # batch
S = 8          # sequence length
H = 32         # hidden size
V = 128        # vocab size (synthetic stand-in for the BERT vocab)
C = 4          # number of classes produced by the backbone classifier
HPAD = 128     # augmented hidden (H features + 1 bias column), padded to lanes
CPAD = 128     # classifier output padded to a full lane width
OUT_ROWS = 8   # single dense (8,128) output slab
DET_ROW = B    # row of the output slab carrying the per-example detection flag
THRESHOLD = 0.5

# Only this configuration is implemented (deterministic path).  Enforced here
# so the shared-logits shortcut can never silently change semantics.
MODE, UPDATE, MASKOP = "argmax", "no", None
assert MODE == "argmax" and UPDATE == "no" and MASKOP is None

_VMEM = pl.BlockSpec(memory_space=pltpu.MemorySpace.VMEM)


def _argmax_lastdim(x):
    """argmax over the last axis, keepdims=True, int32, first-occurrence ties."""
    m = jnp.max(x, axis=-1, keepdims=True)
    n = x.shape[-1]
    idx = jax.lax.broadcasted_iota(jnp.int32, x.shape, dimension=x.ndim - 1)
    cand = jnp.where(x == m, idx, jnp.int32(n))
    return jnp.min(cand, axis=-1, keepdims=True)


# --------------------------- fused forward kernel ----------------------------
def _fused_defender_kernel(x_ref, mask_ref, w_ref, out_ref):
    # w_ref: (4, 128, 128) bf16 packed weight slab
    #   [0] det_emb_aug : (V, HPAD)  cols 0..H-1 = embedding, col H = 1 (bias hook)
    #   [1] det_wb      : (HPAD, V)  rows 0..H-1 = MLM head W, row H = bias
    #   [2] bb_emb_aug  : (V, HPAD)  backbone embedding, same augmentation
    #   [3] bb_wb       : (HPAD, CPAD) classifier W (cols 0..C-1), row H = bias

    # ---- detector: one-hot MXU gather -> MLM head matmul -> argmax tokens ----
    x = x_ref[...]                                                # (B*S, 1) int32
    iota_v = jax.lax.broadcasted_iota(jnp.int32, (B * S, V), 1)
    onehot_x = (iota_v == x).astype(jnp.bfloat16)                 # (B*S, V) bf16, exact
    emb = jnp.dot(onehot_x, w_ref[0],
                  preferred_element_type=jnp.float32)             # (B*S, HPAD), col H == 1
    # emb rows are exact copies of bf16 table rows -> the cast back is exact.
    mlm_logits = jnp.dot(emb.astype(jnp.bfloat16), w_ref[1],
                         preferred_element_type=jnp.float32)      # (B*S, V), bias folded in
    tok = _argmax_lastdim(mlm_logits)                             # (B*S, 1) int32 (mode='argmax')

    # ---- backbone: re-embed argmax tokens via one-hot MXU gather -------------
    onehot_t = (iota_v == tok).astype(jnp.bfloat16)               # (B*S, V)
    bemb = jnp.dot(onehot_t, w_ref[2],
                   preferred_element_type=jnp.float32)            # (B*S, HPAD), col H == 1
    bemb3 = bemb.reshape(B, S, HPAD)

    # ---- masked mean pool on the VPU (multiply + sublane reduce) -------------
    m = mask_ref[...]                                             # (B, S) f32
    denom = jnp.maximum(jnp.sum(m, axis=1, keepdims=True), 1.0)   # guard all-pad rows
    w3 = (m / denom)[:, :, None]                                  # (B, S, 1)
    pooled = jnp.sum(bemb3 * w3, axis=1)                          # (B, HPAD); col H pools to 1

    # ---- classifier (bias folded via the pooled ones-column) -----------------
    cls = jnp.dot(pooled.astype(jnp.bfloat16), w_ref[3],
                  preferred_element_type=jnp.float32)             # (B, CPAD)

    # ---- detection: constant-folded dead branch -------------------------------
    # Deterministic path => logits_1 == logits_0, so argmax(logits_0) ==
    # argmax(logits_1), `detected` is always False and get_entropy() is a no-op.
    # Output slab: rows 0..B-1 = logits, row DET_ROW lanes 0..B-1 = detection
    # flags (zeros), remaining rows = padding.  One dense, unmasked store.
    out_ref[...] = jnp.concatenate(
        [cls, jnp.zeros((OUT_ROWS - B, CPAD), jnp.float32)], axis=0)


def _fused_forward(params, x_col, mask_f32):
    slab = pl.pallas_call(
        _fused_defender_kernel,
        out_shape=jax.ShapeDtypeStruct((OUT_ROWS, CPAD), jnp.float32),
        in_specs=[_VMEM, _VMEM, _VMEM],
        out_specs=_VMEM,
    )(x_col, mask_f32, params["weights"])
    logits = slab[:B, :C]
    detected = slab[DET_ROW, :B] != 0.0      # always False on the deterministic path
    return logits, detected


# ------------------------------- parameters ---------------------------------
def init_params(key):
    ks = jax.random.split(key, 6)
    s = 0.05
    det_emb = jax.random.normal(ks[0], (V, H), jnp.float32) * s
    det_w = jax.random.normal(ks[1], (H, V), jnp.float32) * s
    det_b = jax.random.normal(ks[2], (V,), jnp.float32) * s
    bb_emb = jax.random.normal(ks[3], (V, H), jnp.float32) * s
    bb_w = jax.random.normal(ks[4], (H, C), jnp.float32) * s
    bb_b = jax.random.normal(ks[5], (C,), jnp.float32) * s

    # Bias-augment, pad to 128x128, and pack everything into one bf16 slab.
    det_emb_aug = jnp.zeros((V, HPAD), jnp.float32)
    det_emb_aug = det_emb_aug.at[:, :H].set(det_emb).at[:, H].set(1.0)
    det_wb = jnp.zeros((HPAD, V), jnp.float32)
    det_wb = det_wb.at[:H, :].set(det_w).at[H, :].set(det_b)
    bb_emb_aug = jnp.zeros((V, HPAD), jnp.float32)
    bb_emb_aug = bb_emb_aug.at[:, :H].set(bb_emb).at[:, H].set(1.0)
    bb_wb = jnp.zeros((HPAD, CPAD), jnp.float32)
    bb_wb = bb_wb.at[:H, :C].set(bb_w).at[H, :C].set(bb_b)

    weights = jnp.stack([det_emb_aug, det_wb, bb_emb_aug, bb_wb]
                        ).astype(jnp.bfloat16)                    # (4, 128, 128)
    return {"weights": weights}


# ------------------------------ forward path --------------------------------
def rock_solid_defender_forward(params, X, types, masks, X_len,
                                return_mask=False, using_detection=True,
                                threshold=THRESHOLD):
    # maskop=None -> no __rmlm; update='no' -> lm_forward_no_grad path;
    # mode='argmax' -> deterministic, so the entropy gate is provably inert and
    # `threshold` never influences the result (kept for signature parity only).
    del types, X_len, threshold  # unused by the synthetic backbone / dead gate
    x_col = X.reshape(B * S, 1).astype(jnp.int32)   # layout plumbing only
    mask_f32 = masks.astype(jnp.float32)
    logits, detected = _fused_forward(params, x_col, mask_f32)
    if not using_detection:
        detected = jnp.zeros((logits.shape[0],), jnp.bool_)
    if return_mask:
        return logits, detected
    return logits


# ---------------------------------- main -------------------------------------
if __name__ == "__main__":
    key = jax.random.PRNGKey(0)
    kp, kx = jax.random.split(key)
    params = init_params(kp)

    X = jax.random.randint(kx, (B, S), 0, V, dtype=jnp.int32)       # token ids
    types = jnp.zeros((B, S), jnp.int32)                            # token_type_ids
    masks = jnp.concatenate(
        [jnp.ones((B, S - 2), jnp.int32), jnp.zeros((B, 2), jnp.int32)], axis=1)
    X_len = jnp.sum(masks, axis=1).astype(jnp.int32)

    logits, detected = rock_solid_defender_forward(
        params, X, types, masks, X_len, return_mask=True)
    logits = jax.block_until_ready(logits)
    detected = jax.block_until_ready(detected)

    assert logits.shape == (B, C) and logits.dtype == jnp.float32
    assert detected.shape == (B,) and detected.dtype == jnp.bool_
    assert not bool(jnp.any(detected))   # deterministic path: detection never fires
    print("KERNEL_OK")
</pallas_src>

<mosaic_0001>
module attributes {stable_mosaic.version = 11 : i64} {
  func.func @_fused_defender_kernel(%arg0: memref<16x1xi32, #tpu.memory_space<vmem>>, %arg1: memref<2x8xf32, #tpu.memory_space<vmem>>, %arg2: memref<4x128x128xbf16, #tpu.memory_space<vmem>>, %arg3: memref<8x128xf32, #tpu.memory_space<vmem>>) attributes {dimension_semantics = [], scalar_prefetch = 0 : i64, scratch_operands = 0 : i64, tpu.core_type = #tpu.core_type<tc>} {
    %c0 = arith.constant 0 : index
    %c0_0 = arith.constant 0 : index
    %0 = vector.load %arg0[%c0, %c0_0] : memref<16x1xi32, #tpu.memory_space<vmem>>, vector<16x1xi32>
    %1 = tpu.iota {dimensions = array<i32: 1>} : vector<16x128xi32>
    %2 = vector.broadcast %0 : vector<16x1xi32> to vector<16x128xi32>
    %3 = arith.cmpi eq, %1, %2 : vector<16x128xi32>
    %4 = arith.extui %3 : vector<16x128xi1> to vector<16x128xi32>
    %5 = arith.sitofp %4 : vector<16x128xi32> to vector<16x128xf32>
    %6 = arith.truncf %5 : vector<16x128xf32> to vector<16x128xbf16>
    %c0_1 = arith.constant 0 : index
    %c0_2 = arith.constant 0 : index
    %c0_3 = arith.constant 0 : index
    %7 = vector.load %arg2[%c0_1, %c0_2, %c0_3] : memref<4x128x128xbf16, #tpu.memory_space<vmem>>, vector<1x128x128xbf16>
    %8 = vector.shape_cast %7 : vector<1x128x128xbf16> to vector<128x128xbf16>
    %cst = arith.constant dense<0.000000e+00> : vector<16x128xf32>
    %9 = tpu.matmul %6, %8, %cst {dimension_numbers = #tpu.dot_dimension_numbers<[1], [0], [0], [1], [0, 0, 1, 1], [], []>} : vector<16x128xbf16>, vector<128x128xbf16>, vector<16x128xf32> -> vector<16x128xf32>
    %10 = arith.truncf %9 : vector<16x128xf32> to vector<16x128xbf16>
    %c1 = arith.constant 1 : index
    %c0_4 = arith.constant 0 : index
    %c0_5 = arith.constant 0 : index
    %11 = vector.load %arg2[%c1, %c0_4, %c0_5] : memref<4x128x128xbf16, #tpu.memory_space<vmem>>, vector<1x128x128xbf16>
    %12 = vector.shape_cast %11 : vector<1x128x128xbf16> to vector<128x128xbf16>
    %cst_6 = arith.constant dense<0.000000e+00> : vector<16x128xf32>
    %13 = tpu.matmul %10, %12, %cst_6 {dimension_numbers = #tpu.dot_dimension_numbers<[1], [0], [0], [1], [0, 0, 1, 1], [], []>} : vector<16x128xbf16>, vector<128x128xbf16>, vector<16x128xf32> -> vector<16x128xf32>
    %cst_7 = arith.constant dense<0xFF800000> : vector<16xf32>
    %14 = vector.multi_reduction <maximumf>, %13, %cst_7 [1] : vector<16x128xf32> to vector<16xf32>
    %15 = vector.shape_cast %14 : vector<16xf32> to vector<16x1xf32>
    %16 = tpu.iota {dimensions = array<i32: 1>} : vector<16x128xi32>
    %17 = vector.broadcast %15 : vector<16x1xf32> to vector<16x128xf32>
    %18 = arith.cmpf oeq, %13, %17 : vector<16x128xf32>
    %c128_i32 = arith.constant 128 : i32
    %19 = vector.broadcast %c128_i32 : i32 to vector<16x128xi32>
    %20 = arith.select %18, %16, %19 : vector<16x128xi1>, vector<16x128xi32>
    %cst_8 = arith.constant dense<2147483647> : vector<16xi32>
    %21 = vector.multi_reduction <minsi>, %20, %cst_8 [1] : vector<16x128xi32> to vector<16xi32>
    %22 = vector.shape_cast %21 : vector<16xi32> to vector<16x1xi32>
    %23 = vector.broadcast %22 : vector<16x1xi32> to vector<16x128xi32>
    %24 = arith.cmpi eq, %1, %23 : vector<16x128xi32>
    %25 = arith.extui %24 : vector<16x128xi1> to vector<16x128xi32>
    %26 = arith.sitofp %25 : vector<16x128xi32> to vector<16x128xf32>
    %27 = arith.truncf %26 : vector<16x128xf32> to vector<16x128xbf16>
    %c2 = arith.constant 2 : index
    %c0_9 = arith.constant 0 : index
    %c0_10 = arith.constant 0 : index
    %28 = vector.load %arg2[%c2, %c0_9, %c0_10] : memref<4x128x128xbf16, #tpu.memory_space<vmem>>, vector<1x128x128xbf16>
    %29 = vector.shape_cast %28 : vector<1x128x128xbf16> to vector<128x128xbf16>
    %cst_11 = arith.constant dense<0.000000e+00> : vector<16x128xf32>
    %30 = tpu.matmul %27, %29, %cst_11 {dimension_numbers = #tpu.dot_dimension_numbers<[1], [0], [0], [1], [0, 0, 1, 1], [], []>} : vector<16x128xbf16>, vector<128x128xbf16>, vector<16x128xf32> -> vector<16x128xf32>
    %31 = vector.shape_cast %30 : vector<16x128xf32> to vector<2x8x128xf32>
    %c0_12 = arith.constant 0 : index
    %c0_13 = arith.constant 0 : index
    %32 = vector.load %arg1[%c0_12, %c0_13] : memref<2x8xf32, #tpu.memory_space<vmem>>, vector<2x8xf32>
    %cst_14 = arith.constant dense<0.000000e+00> : vector<2xf32>
    %33 = vector.multi_reduction <add>, %32, %cst_14 [1] : vector<2x8xf32> to vector<2xf32>
    %34 = vector.shape_cast %33 : vector<2xf32> to vector<2x1xf32>
    %cst_15 = arith.constant 1.000000e+00 : f32
    %35 = vector.broadcast %cst_15 : f32 to vector<2x1xf32>
    %36 = arith.maximumf %34, %35 : vector<2x1xf32>
    %37 = vector.broadcast %36 : vector<2x1xf32> to vector<2x8xf32>
    %38 = arith.divf %32, %37 : vector<2x8xf32>
    %39 = vector.shape_cast %38 : vector<2x8xf32> to vector<2x8x1xf32>
    %40 = vector.broadcast %39 : vector<2x8x1xf32> to vector<2x8x128xf32>
    %41 = arith.mulf %31, %40 : vector<2x8x128xf32>
    %cst_16 = arith.constant dense<0.000000e+00> : vector<2x128xf32>
    %42 = vector.multi_reduction <add>, %41, %cst_16 [1] : vector<2x8x128xf32> to vector<2x128xf32>
    %43 = arith.truncf %42 : vector<2x128xf32> to vector<2x128xbf16>
    %c3 = arith.constant 3 : index
    %c0_17 = arith.constant 0 : index
    %c0_18 = arith.constant 0 : index
    %44 = vector.load %arg2[%c3, %c0_17, %c0_18] : memref<4x128x128xbf16, #tpu.memory_space<vmem>>, vector<1x128x128xbf16>
    %45 = vector.shape_cast %44 : vector<1x128x128xbf16> to vector<128x128xbf16>
    %cst_19 = arith.constant dense<0.000000e+00> : vector<2x128xf32>
    %46 = tpu.matmul %43, %45, %cst_19 {dimension_numbers = #tpu.dot_dimension_numbers<[1], [0], [0], [1], [0, 0, 1, 1], [], []>} : vector<2x128xbf16>, vector<128x128xbf16>, vector<2x128xf32> -> vector<2x128xf32>
    %cst_20 = arith.constant 0.000000e+00 : f32
    %47 = vector.broadcast %cst_20 : f32 to vector<6x128xf32>
    %48 = tpu.concatenate %46, %47 in 0 : vector<2x128xf32>, vector<6x128xf32> -> vector<8x128xf32>
    %c0_21 = arith.constant 0 : index
    %c0_22 = arith.constant 0 : index
    %49 = vector.load %arg3[%c0_21, %c0_22] : memref<8x128xf32, #tpu.memory_space<vmem>>, vector<8x128xf32>
    tpu.vector_store %arg3[%c0_21, %c0_22], %48 {strides = array<i32>} : memref<8x128xf32, #tpu.memory_space<vmem>>, vector<8x128xf32>,
    return
  }
}

</mosaic_0001>

<llo_original>
// kernel: tpu_custom_call.1
$region0: #{tpu_custom_call.1}
  #allocation0 [shape = 'u32[]', space=smem, size = 0x4, offset = 0x4, fixed_abs, tag = 'smem constant byte address 0x4 - core index']
  #allocation1 [shape = 'u32[72,128]{1,0:T(1,128)}', space=vmem, size = 0x9000, scoped, tag = 'internal scratch']
  %s0 = inlined_call_operand.vmem [shape: s32[16,1], index: 0, kind: input, shape index: {}]
  %s1 = inlined_call_operand.vmem [shape: f32[2,8], index: 1, kind: input, shape index: {}]
  %s2 = inlined_call_operand.hbm [shape: bf16[4,128,128], index: 2, kind: input, shape index: {}]
  %s3 = inlined_call_operand.hbm [shape: f32[8,128], index: 3, kind: output, shape index: {}]
  %s4 = sld [smem:[#allocation0]]
  $region26: #{tpu_custom_call.1} parent=0
    _
  %s6 = ssub.s32 1, %s4
  %s7 = scalar_select 0, %s6, %s4
  $region1: #{tpu_custom_call.1} parent=0
    #allocation2 [shape = 'u8[131072]{0}', space=vmem, size = 0x20000, scoped, tag = 'input window, operand 2, single buffered']
    #allocation3 [shape = 's32[1]{0}', space=sflag, size = 0x4, scoped, tag = 'scoped memory for tpu_custom_call.1']
    #allocation4 [shape = 's32[1]{0}', space=sflag, size = 0x4, scoped, tag = 'scoped memory for tpu_custom_call.1']
    #allocation5 [shape = 'u8[4096]{0}', space=vmem, size = 0x1000, scoped, tag = 'output window, operand 0, single buffered']
    %8 = vsyncpa [#allocation3], 0
    %9 = vsyncpa [#allocation4], 0
    // Predicated region
    $region2: #{tpu_custom_call.1} parent=1 // pred_check
      _
    $region3: #{tpu_custom_call.1} parent=1 // pred_check_branch
      %11 = sbr.rel (0) target = $region5
    $region4: #{tpu_custom_call.1} parent=1 // pred_region
      _
    $region5: #{tpu_custom_call.1} parent=1 // pred_fallthru
      _
    // Predicated region
    $region6: #{tpu_custom_call.1} parent=1 // pred_check
      _
    $region7: #{tpu_custom_call.1} parent=1 // pred_check_branch
      %13 = sbr.rel (0) target = $region9
    $region8: #{tpu_custom_call.1} parent=1 // pred_region
      _
    $region9: #{tpu_custom_call.1} parent=1 // pred_fallthru
      _
    // Predicated region
    $region10: #{tpu_custom_call.1} parent=1 // pred_check
      _
    $region11: #{tpu_custom_call.1} parent=1 // pred_check_branch
      %15 = sbr.rel (0) target = $region13
    $region12: #{tpu_custom_call.1} parent=1 // pred_region
      %17 = vsyncadd [#allocation3], 0
      %s18 = sshll.u32 %s2, 4
      %s19 = int_to_ptr.hbm [resolvable:$true] %s18
      %s20 = sshll.u32 [#allocation2], 4
      %s21 = int_to_ptr.vmem [resolvable:$true] %s20
      %26 = dma.hbm_to_vmem [thread:$0]  %s19, 4096, %s21, [#allocation3], 64, 64, 4
    $region13: #{tpu_custom_call.1} parent=1 // pred_fallthru
      _
    // Predicated region
    $region14: #{tpu_custom_call.1} parent=1 // pred_check
      _
    $region15: #{tpu_custom_call.1} parent=1 // pred_check_branch
      %28 = sbr.rel (0) target = $region17
    $region16: #{tpu_custom_call.1} parent=1 // pred_region
      %30 = dma.done [#allocation3], 4096
    $region17: #{tpu_custom_call.1} parent=1 // pred_fallthru
      _
    %v31 = vld [vmem:[%s0] sm:$0xff]
    %v32 = vld [vmem:[%s0 + $0x8] sm:$0xff]
    %v33 = vlaneseq
    %v34 = vand.u32 %v33, 127
    %35 = vset.pattern.permute.xlu0 0
    %36 = vperm.xlu0 %35, %v31
    %v37 = vpop.permute.xlu0 %36
    %38 = vset.pattern.permute.xlu0 0
    %39 = vperm.xlu0 %38, %v32
    %v40 = vpop.permute.xlu0 %39
    %vm41 = vcmp.eq.s32.totalorder %v34, %v37
    %vm42 = vcmp.eq.s32.totalorder %v34, %v40
    %v43 = vsel %vm41, 1, 0
    %v44 = vsel %vm42, 1, 0
    %v45 = vcvt.s32.f32 %v43
    %v46 = vcvt.s32.f32 %v44
    %v47 = vpack.c.bf16 %v46, %v45
    %v48 = vld [vmem:[#allocation2] sm:$0xf]
    %v49 = vld [vmem:[#allocation2 + $0x4] sm:$0xf]
    %v50 = vld [vmem:[#allocation2 + $0x8] sm:$0xf]
    %v51 = vld [vmem:[#allocation2 + $0xc] sm:$0xf]
    %v52 = vld [vmem:[#allocation2 + $0x10] sm:$0xf]
    %v53 = vld [vmem:[#allocation2 + $0x14] sm:$0xf]
    %v54 = vld [vmem:[#allocation2 + $0x18] sm:$0xf]
    %v55 = vld [vmem:[#allocation2 + $0x1c] sm:$0xf]
    %v56 = vld [vmem:[#allocation2 + $0x20] sm:$0xf]
    %v57 = vld [vmem:[#allocation2 + $0x24] sm:$0xf]
    %v58 = vld [vmem:[#allocation2 + $0x28] sm:$0xf]
    %v59 = vld [vmem:[#allocation2 + $0x2c] sm:$0xf]
    %v60 = vld [vmem:[#allocation2 + $0x30] sm:$0xf]
    %v61 = vld [vmem:[#allocation2 + $0x34] sm:$0xf]
    %v62 = vld [vmem:[#allocation2 + $0x38] sm:$0xf]
    %v63 = vld [vmem:[#allocation2 + $0x3c] sm:$0xf]
    %v80 = vunpack.c.l.b16 %v48
    %v81 = vunpack.c.l.b16 %v49
    %v82 = vunpack.c.l.b16 %v50
    %v83 = vunpack.c.l.b16 %v51
    %v84 = vunpack.c.l.b16 %v52
    %v85 = vunpack.c.l.b16 %v53
    %v86 = vunpack.c.l.b16 %v54
    %v87 = vunpack.c.l.b16 %v55
    %v88 = vunpack.c.l.b16 %v56
    %v89 = vunpack.c.l.b16 %v57
    %v90 = vunpack.c.l.b16 %v58
    %v91 = vunpack.c.l.b16 %v59
    %v92 = vunpack.c.l.b16 %v60
    %v93 = vunpack.c.l.b16 %v61
    %v94 = vunpack.c.l.b16 %v62
    %v95 = vunpack.c.l.b16 %v63
    %v96 = vpack.c.b16 %v81, %v80
    %v97 = vpack.c.b16 %v83, %v82
    %v98 = vpack.c.b16 %v85, %v84
    %v99 = vpack.c.b16 %v87, %v86
    %v100 = vpack.c.b16 %v89, %v88
    %v101 = vpack.c.b16 %v91, %v90
    %v102 = vpack.c.b16 %v93, %v92
    %v103 = vpack.c.b16 %v95, %v94
    %112 = vmatpush.bf16.msra.mxu0 %v103
    %113 = vmatpush.bf16.msra.mxu0 %v102
    %114 = vmatpush.bf16.msra.mxu0 %v101
    %115 = vmatpush.bf16.msra.mxu0 %v100
    %116 = vmatpush.bf16.msra.mxu0 %v99
    %117 = vmatpush.bf16.msra.mxu0 %v98
    %118 = vmatpush.bf16.msra.mxu0 %v97
    %119 = vmatpush.bf16.msra.mxu0 %v96
    %120 = vmatmul.bf16.gmra.mxu0 %v47
    %v121 = vpop.f32.mrf.mxu0
    %v122 = vadd.f32 0.0, %v121
    %v123 = vpop.f32.mrf.mxu0
    %v124 = vadd.f32 0.0, %v123
    %125 = vdwg.mxu0
    %v126 = vpack.c.bf16 %v124, %v122
    %s127 = scalar_lea.vmem [#allocation2], 64
    %v128 = vld [vmem:[%s127] sm:$0xf]
    %v129 = vld [vmem:[%s127 + $0x4] sm:$0xf]
    %v130 = vld [vmem:[%s127 + $0x8] sm:$0xf]
    %v131 = vld [vmem:[%s127 + $0xc] sm:$0xf]
    %v132 = vld [vmem:[%s127 + $0x10] sm:$0xf]
    %v133 = vld [vmem:[%s127 + $0x14] sm:$0xf]
    %v134 = vld [vmem:[%s127 + $0x18] sm:$0xf]
    %v135 = vld [vmem:[%s127 + $0x1c] sm:$0xf]
    %v136 = vld [vmem:[%s127 + $0x20] sm:$0xf]
    %v137 = vld [vmem:[%s127 + $0x24] sm:$0xf]
    %v138 = vld [vmem:[%s127 + $0x28] sm:$0xf]
    %v139 = vld [vmem:[%s127 + $0x2c] sm:$0xf]
    %v140 = vld [vmem:[%s127 + $0x30] sm:$0xf]
    %v141 = vld [vmem:[%s127 + $0x34] sm:$0xf]
    %v142 = vld [vmem:[%s127 + $0x38] sm:$0xf]
    %v143 = vld [vmem:[%s127 + $0x3c] sm:$0xf]
    %v160 = vunpack.c.l.b16 %v128
    %v161 = vunpack.c.l.b16 %v129
    %v162 = vunpack.c.l.b16 %v130
    %v163 = vunpack.c.l.b16 %v131
    %v164 = vunpack.c.l.b16 %v132
    %v165 = vunpack.c.l.b16 %v133
    %v166 = vunpack.c.l.b16 %v134
    %v167 = vunpack.c.l.b16 %v135
    %v168 = vunpack.c.l.b16 %v136
    %v169 = vunpack.c.l.b16 %v137
    %v170 = vunpack.c.l.b16 %v138
    %v171 = vunpack.c.l.b16 %v139
    %v172 = vunpack.c.l.b16 %v140
    %v173 = vunpack.c.l.b16 %v141
    %v174 = vunpack.c.l.b16 %v142
    %v175 = vunpack.c.l.b16 %v143
    %v176 = vpack.c.b16 %v161, %v160
    %v177 = vpack.c.b16 %v163, %v162
    %v178 = vpack.c.b16 %v165, %v164
    %v179 = vpack.c.b16 %v167, %v166
    %v180 = vpack.c.b16 %v169, %v168
    %v181 = vpack.c.b16 %v171, %v170
    %v182 = vpack.c.b16 %v173, %v172
    %v183 = vpack.c.b16 %v175, %v174
    %192 = vmatpush.bf16.msra.mxu0 %v183
    %193 = vmatpush.bf16.msra.mxu0 %v182
    %194 = vmatpush.bf16.msra.mxu0 %v181
    %195 = vmatpush.bf16.msra.mxu0 %v180
    %196 = vmatpush.bf16.msra.mxu0 %v179
    %197 = vmatpush.bf16.msra.mxu0 %v178
    %198 = vmatpush.bf16.msra.mxu0 %v177
    %199 = vmatpush.bf16.msra.mxu0 %v176
    %200 = vmatmul.bf16.gmra.mxu0 %v126
    %v201 = vpop.f32.mrf.mxu0
    %v202 = vadd.f32 0.0, %v201
    %v203 = vpop.f32.mrf.mxu0
    %v204 = vadd.f32 0.0, %v203
    %205 = vdwg.mxu0
    %206 = vmax.xlane.f32.xlu0 %v202
    %v207 = vpop.xlane.xlu0 %206
    %208 = vmax.xlane.f32.xlu0 %v204
    %v209 = vpop.xlane.xlu0 %208
    %vm210 = vcmp.eq.f32.partialorder %v202, %v207
    %vm211 = vcmp.eq.f32.partialorder %v204, %v209
    %v212 = vsel %vm210, %v34, 128
    %v213 = vsel %vm211, %v34, 128
    %v214 = vand.u32 %v212, 65535
    %v215 = vshra.s32 %v212, 16
    %v216 = vcvt.s32.f32 %v214
    %v217 = vcvt.s32.f32 %v215
    %218 = vmin.xlane.f32.xlu0 %v217
    %v219 = vpop.xlane.xlu0 %218
    %vm220 = vcmp.eq.f32.partialorder %v217, %v219
    %v221 = vsel %vm220, %v216, inf
    %222 = vmin.xlane.f32.xlu0 %v221
    %v223 = vpop.xlane.xlu0 %222
    %v224 = vcvt.f32.s32 %v223
    %v225 = vcvt.f32.s32 %v219
    %v226 = vshll.u32 %v225, 16
    %v227 = vadd.s32 %v226, %v224
    %v228 = vand.u32 %v213, 65535
    %v229 = vshra.s32 %v213, 16
    %v230 = vcvt.s32.f32 %v228
    %v231 = vcvt.s32.f32 %v229
    %232 = vmin.xlane.f32.xlu0 %v231
    %v233 = vpop.xlane.xlu0 %232
    %vm234 = vcmp.eq.f32.partialorder %v231, %v233
    %v235 = vsel %vm234, %v230, inf
    %236 = vmin.xlane.f32.xlu0 %v235
    %v237 = vpop.xlane.xlu0 %236
    %v238 = vcvt.f32.s32 %v237
    %v239 = vcvt.f32.s32 %v233
    %v240 = vshll.u32 %v239, 16
    %v241 = vadd.s32 %v240, %v238
    %vm242 = vcmp.eq.s32.totalorder %v34, %v227
    %vm243 = vcmp.eq.s32.totalorder %v34, %v241
    %v244 = vsel %vm242, 1, 0
    %v245 = vsel %vm243, 1, 0
    %v246 = vcvt.s32.f32 %v244
    %v247 = vcvt.s32.f32 %v245
    %v248 = vpack.c.bf16 %v247, %v246
    %s249 = scalar_lea.vmem [#allocation2], 128
    %v250 = vld [vmem:[%s249] sm:$0xf]
    %v251 = vld [vmem:[%s249 + $0x4] sm:$0xf]
    %v252 = vld [vmem:[%s249 + $0x8] sm:$0xf]
    %v253 = vld [vmem:[%s249 + $0xc] sm:$0xf]
    %v254 = vld [vmem:[%s249 + $0x10] sm:$0xf]
    %v255 = vld [vmem:[%s249 + $0x14] sm:$0xf]
    %v256 = vld [vmem:[%s249 + $0x18] sm:$0xf]
    %v257 = vld [vmem:[%s249 + $0x1c] sm:$0xf]
    %v258 = vld [vmem:[%s249 + $0x20] sm:$0xf]
    %v259 = vld [vmem:[%s249 + $0x24] sm:$0xf]
    %v260 = vld [vmem:[%s249 + $0x28] sm:$0xf]
    %v261 = vld [vmem:[%s249 + $0x2c] sm:$0xf]
    %v262 = vld [vmem:[%s249 + $0x30] sm:$0xf]
    %v263 = vld [vmem:[%s249 + $0x34] sm:$0xf]
    %v264 = vld [vmem:[%s249 + $0x38] sm:$0xf]
    %v265 = vld [vmem:[%s249 + $0x3c] sm:$0xf]
    %v282 = vunpack.c.l.b16 %v250
    %v283 = vunpack.c.l.b16 %v251
    %v284 = vunpack.c.l.b16 %v252
    %v285 = vunpack.c.l.b16 %v253
    %v286 = vunpack.c.l.b16 %v254
    %v287 = vunpack.c.l.b16 %v255
    %v288 = vunpack.c.l.b16 %v256
    %v289 = vunpack.c.l.b16 %v257
    %v290 = vunpack.c.l.b16 %v258
    %v291 = vunpack.c.l.b16 %v259
    %v292 = vunpack.c.l.b16 %v260
    %v293 = vunpack.c.l.b16 %v261
    %v294 = vunpack.c.l.b16 %v262
    %v295 = vunpack.c.l.b16 %v263
    %v296 = vunpack.c.l.b16 %v264
    %v297 = vunpack.c.l.b16 %v265
    %v298 = vpack.c.b16 %v283, %v282
    %v299 = vpack.c.b16 %v285, %v284
    %v300 = vpack.c.b16 %v287, %v286
    %v301 = vpack.c.b16 %v289, %v288
    %v302 = vpack.c.b16 %v291, %v290
    %v303 = vpack.c.b16 %v293, %v292
    %v304 = vpack.c.b16 %v295, %v294
    %v305 = vpack.c.b16 %v297, %v296
    %314 = vmatpush.bf16.msra.mxu0 %v305
    %315 = vmatpush.bf16.msra.mxu0 %v304
    %316 = vmatpush.bf16.msra.mxu0 %v303
    %317 = vmatpush.bf16.msra.mxu0 %v302
    %318 = vmatpush.bf16.msra.mxu0 %v301
    %319 = vmatpush.bf16.msra.mxu0 %v300
    %320 = vmatpush.bf16.msra.mxu0 %v299
    %321 = vmatpush.bf16.msra.mxu0 %v298
    %322 = vmatmul.bf16.gmra.mxu0 %v248
    %v323 = vpop.f32.mrf.mxu0
    %v324 = vadd.f32 0.0, %v323
    %v325 = vpop.f32.mrf.mxu0
    %v326 = vadd.f32 0.0, %v325
    %327 = vdwg.mxu0
    %v328 = vld [vmem:[%s1] sm:$0x3]
    %vm329 = vcmask 58368
    %v330 = vsel %vm329, %v328, 0.0
    %331 = vadd.xlane.f32.xlu0 %v330
    %v332 = vpop.xlane.xlu0 %331
    %v333 = vmax.f32 %v332, 1.0
    %v334 = vrcp.pop %v333
    %v335 = vmul.f32 %v333, %v334
    %v336 = vsub.f32 1.0, %v335
    %v337 = vmul.f32 %v334, %v336
    %v338 = vadd.f32 %v334, %v337
    %vm339 = vweird.f32 %v333
    %vm340 = vweird.f32 %v334
    %vm341 = vmor %vm339, %vm340
    %v342 = vsel %vm341, %v334, %v338
    %v343 = vand.u32 2147483647, %v333
    %vm344 = vcmp.eq.f32.partialorder %v343, 8.507059e+37
    %v345 = vand.u32 %v333, 2147483648
    %v346 = vor.u32 1.1754944e-38, %v345
    %v347 = vsel %vm344, %v346, %v342
    %v348 = vmul.f32 %v328, %v347
    %v349 = vperm.slane %v348, 0
    %v350 = vlaneseq
    %v351 = vshrl.u32 %v350, 7
    %353 = vset.pattern.permute.xlu0 %v351
    %354 = vperm.xlu0 %353, %v349
    %v355 = vpop.permute.xlu0 %354
    %v356 = vperm.slane %v348, 1
    %v357 = vlaneseq
    %v358 = vshrl.u32 %v357, 7
    %360 = vset.pattern.permute.xlu0 %v358
    %361 = vperm.xlu0 %360, %v356
    %v362 = vpop.permute.xlu0 %361
    %v363 = vmul.f32 %v324, %v355
    %v364 = vmul.f32 %v326, %v362
    %v365 = vrot.slane %v363, 4
    %v366 = vadd.f32 %v363, %v365
    %v367 = vrot.slane %v366, 2
    %v368 = vadd.f32 %v366, %v367
    %v369 = vrot.slane %v368, 1
    %v370 = vadd.f32 %v368, %v369
    %v371 = vrot.slane %v364, 4
    %v372 = vadd.f32 %v364, %v371
    %v373 = vrot.slane %v372, 2
    %v374 = vadd.f32 %v372, %v373
    %v375 = vrot.slane %v374, 1
    %v376 = vadd.f32 %v374, %v375
    %v377 = vpack.c.bf16 %v370, %v370
    %v378 = vpack.c.bf16 %v376, %v376
    %s379 = scalar_lea.vmem [#allocation2], 192
    %v380 = vld [vmem:[%s379] sm:$0xf]
    %v381 = vld [vmem:[%s379 + $0x4] sm:$0xf]
    %v382 = vld [vmem:[%s379 + $0x8] sm:$0xf]
    %v383 = vld [vmem:[%s379 + $0xc] sm:$0xf]
    %v384 = vld [vmem:[%s379 + $0x10] sm:$0xf]
    %v385 = vld [vmem:[%s379 + $0x14] sm:$0xf]
    %v386 = vld [vmem:[%s379 + $0x18] sm:$0xf]
    %v387 = vld [vmem:[%s379 + $0x1c] sm:$0xf]
    %v388 = vld [vmem:[%s379 + $0x20] sm:$0xf]
    %v389 = vld [vmem:[%s379 + $0x24] sm:$0xf]
    %v390 = vld [vmem:[%s379 + $0x28] sm:$0xf]
    %v391 = vld [vmem:[%s379 + $0x2c] sm:$0xf]
    %v392 = vld [vmem:[%s379 + $0x30] sm:$0xf]
    %v393 = vld [vmem:[%s379 + $0x34] sm:$0xf]
    %v394 = vld [vmem:[%s379 + $0x38] sm:$0xf]
    %v395 = vld [vmem:[%s379 + $0x3c] sm:$0xf]
    %v398 = vunpack.c.l.b16 %v377
    %v399 = vunpack.c.l.b16 %v378
    %vm400 = vcmask 1041409
    %v401 = vsel %vm400, %v399, %v398
    %v402 = vpack.c.b16 %v401, %v401
    %v420 = vunpack.c.l.b16 %v380
    %v421 = vunpack.c.l.b16 %v381
    %v422 = vunpack.c.l.b16 %v382
    %v423 = vunpack.c.l.b16 %v383
    %v424 = vunpack.c.l.b16 %v384
    %v425 = vunpack.c.l.b16 %v385
    %v426 = vunpack.c.l.b16 %v386
    %v427 = vunpack.c.l.b16 %v387
    %v428 = vunpack.c.l.b16 %v388
    %v429 = vunpack.c.l.b16 %v389
    %v430 = vunpack.c.l.b16 %v390
    %v431 = vunpack.c.l.b16 %v391
    %v432 = vunpack.c.l.b16 %v392
    %v433 = vunpack.c.l.b16 %v393
    %v434 = vunpack.c.l.b16 %v394
    %v435 = vunpack.c.l.b16 %v395
    %v436 = vpack.c.b16 %v421, %v420
    %v437 = vpack.c.b16 %v423, %v422
    %v438 = vpack.c.b16 %v425, %v424
    %v439 = vpack.c.b16 %v427, %v426
    %v440 = vpack.c.b16 %v429, %v428
    %v441 = vpack.c.b16 %v431, %v430
    %v442 = vpack.c.b16 %v433, %v432
    %v443 = vpack.c.b16 %v435, %v434
    %452 = vmatpush.bf16.msra.mxu0 %v443
    %453 = vmatpush.bf16.msra.mxu0 %v442
    %454 = vmatpush.bf16.msra.mxu0 %v441
    %455 = vmatpush.bf16.msra.mxu0 %v440
    %456 = vmatpush.bf16.msra.mxu0 %v439
    %457 = vmatpush.bf16.msra.mxu0 %v438
    %458 = vmatpush.bf16.msra.mxu0 %v437
    %459 = vmatpush.bf16.msra.mxu0 %v436
    %460 = vmatmul.bf16.gmra.mxu0 %v402
    %v461 = vpop.f32.mrf.mxu0
    %v462 = vadd.f32 0.0, %v461
    %v463 = vpop.f32.mrf.mxu0
    %464 = vdwg.mxu0
    %vm465 = vcmask 1041408
    %v466 = vsel %vm465, %v462, 0.0
    %467 = vst [vmem:[#allocation5] sm:$0xff] %v466
    // Predicated region
    $region18: #{tpu_custom_call.1} parent=1 // pred_check
      _
    $region19: #{tpu_custom_call.1} parent=1 // pred_check_branch
      %469 = sbr.rel (0) target = $region21
    $region20: #{tpu_custom_call.1} parent=1 // pred_region
      %471 = vsyncadd [#allocation4], 0
      %s473 = sshll.u32 [#allocation5], 4
      %s474 = int_to_ptr.vmem [resolvable:$true] %s473
      %s475 = sshll.u32 %s3, 4
      %s476 = int_to_ptr.hbm [resolvable:$true] %s475
      %478 = dma.vmem_to_hbm [thread:$0]  %s474, 128, %s476, [#allocation4]
    $region21: #{tpu_custom_call.1} parent=1 // pred_fallthru
      _
    // Predicated region
    $region22: #{tpu_custom_call.1} parent=1 // pred_check
      _
    $region23: #{tpu_custom_call.1} parent=1 // pred_check_branch
      %480 = sbr.rel (0) target = $region25
    $region24: #{tpu_custom_call.1} parent=1 // pred_region
      %482 = dma.done [#allocation4], 128
    $region25: #{tpu_custom_call.1} parent=1 // pred_fallthru
      _
    %483 = vsyncpa [#allocation3], 1
    %484 = vsyncpa [#allocation4], 1

</llo_original>
